<compile_context>
chip_gen: v6e
topology: v6e:2x2x1
jax: 0.10.0
libtpu: 0.0.40
codegen_flags: <defaults>
</compile_context>

<pallas_src>
import math

import jax
import jax.numpy as jnp
from jax.experimental import pallas as pl
from jax.experimental.pallas import tpu as pltpu

# Conservative resident-tile budget: 2x double-buffered (input + output) tiles
# must fit here. Kept well under v7x's 64 MiB physical VMEM.
_VMEM_TILE_BUDGET_BYTES = 32 * 1024 * 1024
# Scoped VMEM limit we request from the compiler (> v5e's 16 MiB default,
# < v7x's 64 MiB physical).
_VMEM_LIMIT_BYTES = 48 * 1024 * 1024


def _l2_norm_kernel(x_ref, o_ref):
    # x_ref / o_ref: [block_rows, dim] tile in VMEM.
    x = x_ref[...].astype(jnp.float32)
    # Per-row sum of squares, accumulated in f32.
    sq_sum = jnp.sum(x * x, axis=-1, keepdims=True)
    # rsqrt -> EUP, multiply -> VPU (avoids the per-element divide).
    inv_norm = jax.lax.rsqrt(sq_sum)
    o_ref[...] = (x * inv_norm).astype(o_ref.dtype)


def _row_alignment(dtype) -> int:
    # Sublane packing: bf16/f16 pack 16 rows per vreg, f32 packs 8.
    if jnp.dtype(dtype).itemsize == 2:
        return 16
    return 8


def _pick_block_rows(batch: int, dim: int, dtype) -> int:
    """Largest row-aligned block that fits the VMEM tile budget.

    Budget accounts for double-buffered input and output tiles
    (4 x block_rows x dim x itemsize).
    """
    itemsize = jnp.dtype(dtype).itemsize
    align = _row_alignment(dtype)

    per_row_bytes = 4 * dim * itemsize
    max_rows = max(align, (_VMEM_TILE_BUDGET_BYTES // per_row_bytes) // align * align)

    # No point making the block bigger than the (row-aligned) batch.
    batch_rounded = math.ceil(batch / align) * align
    rows = min(max_rows, batch_rounded)

    # Keep at least 2 grid steps when the batch permits, so both TensorCores
    # on v7x get work via the "parallel" row axis.
    if rows >= batch_rounded and batch >= 2 * align:
        half = math.ceil(batch / (2 * align)) * align
        rows = max(align, half)

    return rows


def l2_normalize(x: jnp.ndarray) -> jnp.ndarray:
    """Row-wise L2 normalization of a 2D array [batch, dim]."""
    batch, dim = x.shape
    block_rows = _pick_block_rows(batch, dim, x.dtype)
    grid = (pl.cdiv(batch, block_rows),)

    # TODO(synk): for extremely large `dim` (single row-block exceeding the
    # VMEM budget), add a second "arbitrary" grid axis over dim with a
    # per-row sum-of-squares accumulator in VMEM scratch (two-pass).

    return pl.pallas_call(
        _l2_norm_kernel,
        out_shape=jax.ShapeDtypeStruct((batch, dim), x.dtype),
        grid_spec=pltpu.PrefetchScalarGridSpec(
            num_scalar_prefetch=0,
            grid=grid,
            in_specs=[pl.BlockSpec((block_rows, dim), lambda i: (i, 0))],
            out_specs=pl.BlockSpec((block_rows, dim), lambda i: (i, 0)),
        ),
        compiler_params=pltpu.CompilerParams(
            dimension_semantics=("parallel",),
            vmem_limit_bytes=_VMEM_LIMIT_BYTES,
        ),
    )(x)


if __name__ == "__main__":
    key = jax.random.PRNGKey(0)
    batch, dim = 16, 256
    x = jax.random.normal(key, (batch, dim), dtype=jnp.float32)

    out = l2_normalize(x)
    out = jax.block_until_ready(out)

    # Correctness check against a pure-JAX reference.
    ref = x / jnp.sqrt(jnp.sum(x * x, axis=1, keepdims=True))
    assert jnp.allclose(out, ref, atol=1e-5, rtol=1e-5), "mismatch vs reference"

    # Also exercise a ragged / non-divisible batch path.
    x2 = jax.random.normal(jax.random.PRNGKey(1), (10, 128), dtype=jnp.float32)
    out2 = jax.block_until_ready(l2_normalize(x2))
    ref2 = x2 / jnp.sqrt(jnp.sum(x2 * x2, axis=1, keepdims=True))
    assert jnp.allclose(out2, ref2, atol=1e-5, rtol=1e-5), "mismatch vs reference (ragged)"

    print("KERNEL_OK")
</pallas_src>

<mosaic_0001>
module attributes {stable_mosaic.version = 11 : i64} {
  func.func @_l2_norm_kernel(%arg0: i32, %arg1: memref<8x256xf32, #tpu.memory_space<vmem>>, %arg2: memref<8x256xf32, #tpu.memory_space<vmem>>) attributes {dimension_semantics = [#tpu.dimension_semantics<parallel>], iteration_bounds = array<i64: 2>, scalar_prefetch = 0 : i64, scratch_operands = 0 : i64, tpu.core_type = #tpu.core_type<tc>, window_params = [{transform_indices = @transform_0, window_bounds = array<i64: 8, 256>}, {transform_indices = @transform_1, window_bounds = array<i64: 8, 256>}]} {
    %c0 = arith.constant 0 : index
    %c0_0 = arith.constant 0 : index
    %0 = vector.load %arg1[%c0, %c0_0] : memref<8x256xf32, #tpu.memory_space<vmem>>, vector<8x256xf32>
    %1 = arith.mulf %0, %0 : vector<8x256xf32>
    %cst = arith.constant dense<0.000000e+00> : vector<8xf32>
    %2 = vector.multi_reduction <add>, %1, %cst [1] : vector<8x256xf32> to vector<8xf32>
    %3 = vector.shape_cast %2 : vector<8xf32> to vector<8x1xf32>
    %4 = math.rsqrt %3 : vector<8x1xf32>
    %5 = vector.broadcast %4 : vector<8x1xf32> to vector<8x256xf32>
    %6 = arith.mulf %0, %5 : vector<8x256xf32>
    %c0_1 = arith.constant 0 : index
    %c0_2 = arith.constant 0 : index
    %7 = vector.load %arg2[%c0_1, %c0_2] : memref<8x256xf32, #tpu.memory_space<vmem>>, vector<8x256xf32>
    tpu.vector_store %arg2[%c0_1, %c0_2], %6 {strides = array<i32>} : memref<8x256xf32, #tpu.memory_space<vmem>>, vector<8x256xf32>,
    return
  }
  func.func @transform_0(%arg0: i32) -> (i32, i32) {
    %c0_i32 = arith.constant 0 : i32
    %c0_i32_0 = arith.constant 0 : i32
    return %arg0, %c0_i32 : i32, i32
  }
  func.func @transform_1(%arg0: i32) -> (i32, i32) {
    %c0_i32 = arith.constant 0 : i32
    %c0_i32_0 = arith.constant 0 : i32
    return %arg0, %c0_i32 : i32, i32
  }
}

</mosaic_0001>

<llo_original>
// kernel: tpu_custom_call.1
$region0: #{tpu_custom_call.1}
  #allocation0 [shape = 'u32[]', space=smem, size = 0x4, offset = 0x4, fixed_abs, tag = 'smem constant byte address 0x4 - core index']
  #allocation1 [shape = 'u32[144,128]{1,0:T(1,128)}', space=vmem, size = 0x12000, scoped, tag = 'internal scratch']
  %s0 = inlined_call_operand.hbm [shape: f32[16,256], index: 0, kind: input, shape index: {}]
  %s1 = inlined_call_operand.hbm [shape: f32[16,256], index: 1, kind: output, shape index: {}]
  %s2 = sld [smem:[#allocation0]]
  $region41: #{tpu_custom_call.1} parent=0
    _
  %s4 = ssub.s32 1, %s2
  %s5 = scalar_select 0, %s4, %s2
  $region1: #{tpu_custom_call.1} parent=0
    #allocation2 [shape = 'u8[16384]{0}', space=vmem, size = 0x4000, scoped, tag = 'input window, operand 0']
    #allocation3 [shape = 's32[2]{0}', space=sflag, size = 0x8, scoped, tag = 'scoped memory for tpu_custom_call.1']
    #allocation4 [shape = 's32[2]{0}', space=sflag, size = 0x8, scoped, tag = 'scoped memory for tpu_custom_call.1']
    #allocation5 [shape = 'u8[16384]{0}', space=vmem, size = 0x4000, scoped, tag = 'output window, operand 0']
    %6 = vsyncpa [#allocation3], 0
    %s7 = scalar_lea.sflag [#allocation3], 1
    %8 = vsyncpa %s7, 0
    %9 = vsyncpa [#allocation4], 0
    %s10 = scalar_lea.sflag [#allocation4], 1
    %11 = vsyncpa %s10, 0
    loop: start=0, step=1, limit=4
    $region2: #{tpu_custom_call.1} parent=1 // loop_pre_header
      _
    $region3: #{tpu_custom_call.1} parent=1 // loop_header
      %s13 = sphi 0, %s17
      %p14 = scmp.ge.s32.totalorder %s13, 4
      %s23 = sphi 0, %s25
      %s26 = sphi 0, %s23
      %s27 = sphi 0, %s26
      %s43 = sphi 0, %s27
      %s49 = sphi 0, %s51
      %s52 = sphi 0, %s49
      %s53 = sphi 0, %s52
      %s69 = sphi 0, %s53
    $region4: #{tpu_custom_call.1} parent=1 // loop_header_branch
      %16 = sbr.rel (%p14) target = $region8
    $region5: #{tpu_custom_call.1} parent=1 // loop_body
      %s18 = ssub.s32 %s13, 1
      %s19 = ssub.s32 %s13, 2
      %s20 = sadd.s32 %s13, 1
      %s21 = ssub.s32 %s13, %s20
      %p22 = scmp.eq.s32.totalorder %s21, 0
      %s24 = sadd.s32 %s23, 1
      %s25 = scalar_select %p22, %s23, %s24
      %p28 = pneg %p22
      %p29 = scmp.eq.s32.totalorder %s13, 1
      %p30 = por %p28, %p29
      %p31 = scmp.ne.s32.totalorder %s23, %s26
      %p32 = scmp.eq.s32.totalorder %s13, 0
      %p33 = por %p31, %p32
      %p34 = scmp.ne.s32.totalorder %s23, %s26
      %p35 = scmp.eq.s32.totalorder %s18, 1
      %p36 = por %p34, %p35
      %p37 = scmp.ne.s32.totalorder %s26, %s27
      %p38 = scmp.eq.s32.totalorder %s18, 0
      %p39 = por %p37, %p38
      %p40 = scmp.ne.s32.totalorder %s26, %s27
      %p41 = scmp.eq.s32.totalorder %s19, 1
      %p42 = por %p40, %p41
      %p44 = scmp.ne.s32.totalorder %s27, %s43
      %p45 = scmp.eq.s32.totalorder %s19, 0
      %p46 = por %p44, %p45
      %s47 = ssub.s32 %s13, %s20
      %p48 = scmp.eq.s32.totalorder %s47, 0
      %s50 = sadd.s32 %s49, 1
      %s51 = scalar_select %p48, %s49, %s50
      %p54 = pneg %p48
      %p55 = scmp.eq.s32.totalorder %s13, 1
      %p56 = por %p54, %p55
      %p57 = scmp.ne.s32.totalorder %s49, %s52
      %p58 = scmp.eq.s32.totalorder %s13, 0
      %p59 = por %p57, %p58
      %p60 = scmp.ne.s32.totalorder %s49, %s52
      %p61 = scmp.eq.s32.totalorder %s18, 1
      %p62 = por %p60, %p61
      %p63 = scmp.ne.s32.totalorder %s52, %s53
      %p64 = scmp.eq.s32.totalorder %s18, 0
      %p65 = por %p63, %p64
      %p66 = scmp.ne.s32.totalorder %s52, %s53
      %p67 = scmp.eq.s32.totalorder %s19, 1
      %p68 = por %p66, %p67
      %p70 = scmp.ne.s32.totalorder %s53, %s69
      %p71 = scmp.eq.s32.totalorder %s19, 0
      %p72 = por %p70, %p71
      %p73 = scmp.le.s32.totalorder 1, %s13
      %p74 = scmp.lt.s32.totalorder %s13, 3
      %p75 = pnand %p73, %p74
      %p76 = pneg %p75
      // Predicated region
      $region9: #{tpu_custom_call.1} parent=5 // pred_check
        _
      $region10: #{tpu_custom_call.1} parent=5 // pred_check_branch
        %78 = sbr.rel (%p75) target = $region12
      $region11: #{tpu_custom_call.1} parent=5 // pred_region
        %s79 = ssub.s32 %s13, 1
      $region12: #{tpu_custom_call.1} parent=5 // pred_fallthru
        _
      %p80 = scmp.lt.s32.totalorder %s13, 2
      // Predicated region
      $region13: #{tpu_custom_call.1} parent=5 // pred_check
        %p81 = pneg %p80
      $region14: #{tpu_custom_call.1} parent=5 // pred_check_branch
        %83 = sbr.rel (%p81) target = $region16
      $region15: #{tpu_custom_call.1} parent=5 // pred_region
        // Predicated region
        $region17: #{tpu_custom_call.1} parent=15 // pred_check
          %p84 = pneg %p33
        $region18: #{tpu_custom_call.1} parent=15 // pred_check_branch
          %86 = sbr.rel (%p84) target = $region20
        $region19: #{tpu_custom_call.1} parent=15 // pred_region
          %s87 = sand.u32 %s23, 1
          %s88 = scalar_lea.sflag [#allocation3], %s87
          %s89 = sand.u32 %s23, 1
          %s90 = smul.addr %s89, 16
          %s91 = scalar_lea.vmem [#allocation2], %s90
          %s93 = ssub.s32 256, 256
          %94 = vsyncadd %s88, %s93
          %s95 = smul.addr %s13, 2
          %s96 = smul.addr %s95, 128
          %s97 = scalar_lea.hbm %s0, %s96
          %s99 = sshll.u32 %s91, 4
          %s100 = int_to_ptr.vmem [resolvable:$true] %s99
          %102 = dma.hbm_to_vmem [thread:$0]  %s97, 256, %s100, %s88
        $region20: #{tpu_custom_call.1} parent=15 // pred_fallthru
          _
      $region16: #{tpu_custom_call.1} parent=5 // pred_fallthru
        _
      %p103 = scmp.le.s32.totalorder 1, %s13
      %p104 = scmp.lt.s32.totalorder %s13, 3
      %p105 = pnand %p103, %p104
      %p106 = pneg %p105
      // Predicated region
      $region21: #{tpu_custom_call.1} parent=5 // pred_check
        _
      $region22: #{tpu_custom_call.1} parent=5 // pred_check_branch
        %108 = sbr.rel (%p105) target = $region24
      $region23: #{tpu_custom_call.1} parent=5 // pred_region
        %s109 = ssub.s32 %s13, 1
        %s110 = sand.u32 %s26, 1
        %s111 = scalar_lea.sflag [#allocation3], %s110
        %s112 = sand.u32 %s26, 1
        %s113 = smul.addr %s112, 16
        %s114 = scalar_lea.vmem [#allocation2], %s113
        // Predicated region
        $region25: #{tpu_custom_call.1} parent=23 // pred_check
          %p115 = pneg %p39
        $region26: #{tpu_custom_call.1} parent=23 // pred_check_branch
          %117 = sbr.rel (%p115) target = $region28
        $region27: #{tpu_custom_call.1} parent=23 // pred_region
          %118 = dma.done %s111, 256
        $region28: #{tpu_custom_call.1} parent=23 // pred_fallthru
          _
        %s119 = sand.u32 %s26, 1
        %s120 = scalar_lea.sflag [#allocation3], %s119
        %s121 = sand.u32 %s26, 1
        %s122 = smul.addr %s121, 16
        %s123 = scalar_lea.vmem [#allocation2], %s122
        %p124 = pneg %p39
        %p125 = pneg %p36
        %p126 = pneg %p65
        %p127 = pneg %p62
        %s128 = sand.u32 %s52, 1
        %s129 = scalar_lea.sflag [#allocation4], %s128
        %s130 = sand.u32 %s52, 1
        %s131 = smul.addr %s130, 16
        %s132 = scalar_lea.vmem [#allocation5], %s131
        %v133 = vld [vmem:[%s114] sm:$0xff]
        %v134 = vld [vmem:[%s114 + $0x8] sm:$0xff]
        %v135 = vmul.f32 %v133, %v133
        %v136 = vmul.f32 %v134, %v134
        %v137 = vadd.f32 %v135, %v136
        %138 = vadd.xlane.f32.xlu0 %v137
        %v139 = vpop.xlane.xlu0 %138
        %v140 = vrsqrt.pop %v139
        %v141 = vmul.f32 %v133, %v140
        %v142 = vmul.f32 %v134, %v140
        %143 = vst [vmem:[%s132] sm:$0xff] %v141
        %144 = vst [vmem:[%s132 + $0x8] sm:$0xff] %v142
        %s145 = sand.u32 %s52, 1
        %s146 = scalar_lea.sflag [#allocation4], %s145
        %s147 = sand.u32 %s52, 1
        %s148 = smul.addr %s147, 16
        %s149 = scalar_lea.vmem [#allocation5], %s148
        // Predicated region
        $region29: #{tpu_custom_call.1} parent=23 // pred_check
          %p150 = pneg %p62
        $region30: #{tpu_custom_call.1} parent=23 // pred_check_branch
          %152 = sbr.rel (%p150) target = $region32
        $region31: #{tpu_custom_call.1} parent=23 // pred_region
          %s154 = ssub.s32 256, 256
          %155 = vsyncadd %s146, %s154
          %s156 = smul.addr %s18, 2
          %s157 = smul.addr %s156, 128
          %s158 = scalar_lea.hbm %s1, %s157
          %s160 = sshll.u32 %s149, 4
          %s161 = int_to_ptr.vmem [resolvable:$true] %s160
          %163 = dma.vmem_to_hbm [thread:$0]  %s161, 256, %s158, %s146
        $region32: #{tpu_custom_call.1} parent=23 // pred_fallthru
          _
      $region24: #{tpu_custom_call.1} parent=5 // pred_fallthru
        _
      %p164 = scmp.le.s32.totalorder 2, %s13
      // Predicated region
      $region33: #{tpu_custom_call.1} parent=5 // pred_check
        %p165 = pneg %p164
      $region34: #{tpu_custom_call.1} parent=5 // pred_check_branch
        %167 = sbr.rel (%p165) target = $region36
      $region35: #{tpu_custom_call.1} parent=5 // pred_region
        %s168 = ssub.s32 %s13, 2
        // Predicated region
        $region37: #{tpu_custom_call.1} parent=35 // pred_check
          %p169 = pneg %p68
        $region38: #{tpu_custom_call.1} parent=35 // pred_check_branch
          %171 = sbr.rel (%p169) target = $region40
        $region39: #{tpu_custom_call.1} parent=35 // pred_region
          %s172 = sand.u32 %s53, 1
          %s173 = scalar_lea.sflag [#allocation4], %s172
          %s174 = sand.u32 %s53, 1
          %s175 = smul.addr %s174, 16
          %s176 = scalar_lea.vmem [#allocation5], %s175
          %177 = dma.done %s173, 256
        $region40: #{tpu_custom_call.1} parent=35 // pred_fallthru
          _
      $region36: #{tpu_custom_call.1} parent=5 // pred_fallthru
        _
    $region6: #{tpu_custom_call.1} parent=1 // loop_footer
      %s17 = sadd.s32 1, %s13
    $region7: #{tpu_custom_call.1} parent=1 // loop_footer_branch
      %12 = sbr.rel target = $region3
    $region8: #{tpu_custom_call.1} parent=1 // loop_exit
      _
    %178 = vsyncpa [#allocation3], 1
    %s179 = scalar_lea.sflag [#allocation3], 1
    %180 = vsyncpa %s179, 1
    %181 = vsyncpa [#allocation4], 1
    %s182 = scalar_lea.sflag [#allocation4], 1
    %183 = vsyncpa %s182, 1

</llo_original>
